<compile_context>
chip_gen: v5e
topology: v5e:2x2
jax: 0.10.0
libtpu: 0.0.40
codegen_flags: <defaults>
</compile_context>

<pallas_src>
import functools

import jax
import jax.numpy as jnp
from jax.experimental import pallas as pl
from jax.experimental.pallas import tpu as pltpu

_MAX_COL_TILE = 128 * 1024        # columns; overhead is fully amortized well before this
_VMEM_SLACK = 2 * 1024 * 1024     # headroom for output buffers / internal scratch


def _round_up(x, m):
    return ((x + m - 1) // m) * m


def _round_down(x, m):
    return (x // m) * m


def _vmem_budget_bytes():
    """Half of physical VMEM, capped at 64 MiB (v5e/v6e -> 64 MiB, v7x -> 32 MiB)."""
    try:
        cap = int(pltpu.get_tpu_info().vmem_capacity_bytes)
    except Exception:
        cap = 64 * 1024 * 1024  # conservative fallback, safe on every generation
    return min(cap // 2, 64 * 1024 * 1024)


def _pick_col_tile(hw, c, logit_bytes, label_bytes, vmem_budget):
    """Largest lane-multiple column tile whose double-buffered inputs + scratch fit."""
    per_col = 2 * (c * logit_bytes + label_bytes) + 4   # 2x-buffered inputs + f32 acc
    tile = _round_down(max(vmem_budget - _VMEM_SLACK, per_col * 128) // per_col, 128)
    tile = max(tile, 128)
    tile = min(tile, _MAX_COL_TILE, _round_up(hw, 128))
    return tile


def ce_sum_kernel(logits_ref, labels_ref, out_ref, acc_ref, *, total_cols, mask_tail):
    """Per-(batch, tile-group) sum of softmax cross-entropy over pixels.

    logits_ref : (1, C, TILE) f32/bf16  logits, pixels lane-dense
    labels_ref : (1, 1, TILE) int       class index per pixel
    out_ref    : (1, 1, 128)  f32       partial sum (broadcast on lanes)
    acc_ref    : (1, TILE)    f32       running per-pixel CE accumulator (VMEM)
    """
    t = pl.program_id(2)

    @pl.when(t == 0)
    def _init():
        acc_ref[...] = jnp.zeros_like(acc_ref)

    x = logits_ref[0].astype(jnp.float32)     # (C, TILE)
    lbl = labels_ref[0].astype(jnp.int32)     # (1, TILE)

    # Numerically stable log-sum-exp over the (sublane-side) class axis.
    row_max = jnp.max(x, axis=0, keepdims=True)                                 # (1, TILE)
    lse = row_max + jnp.log(jnp.sum(jnp.exp(x - row_max), axis=0, keepdims=True))

    # Target logit via iota-select (no materialized one-hot stream).
    # TODO(synk): no ignore_index handling -- out-of-range labels contribute ce=lse,
    # matching a plain nn.CrossEntropyLoss without ignore_index.
    cls_iota = jax.lax.broadcasted_iota(jnp.int32, x.shape, 0)                  # (C, TILE)
    tgt = jnp.sum(jnp.where(cls_iota == lbl, x, 0.0), axis=0, keepdims=True)    # (1, TILE)

    ce = lse - tgt                                                              # (1, TILE)

    if mask_tail:  # static: emitted only when HW % TILE != 0
        tile = x.shape[1]
        col_start = (pl.program_id(1) * pl.num_programs(2) + t) * tile
        is_tail = col_start + tile > total_cols

        @pl.when(is_tail)          # only the single straddling tile pays the mask cost
        def _masked():
            col = jax.lax.broadcasted_iota(jnp.int32, (1, tile), 1) + col_start
            acc_ref[...] += jnp.where(col < total_cols, ce, 0.0)

        @pl.when(jnp.logical_not(is_tail))
        def _unmasked():
            acc_ref[...] += ce
    else:
        acc_ref[...] += ce

    @pl.when(t == pl.num_programs(2) - 1)
    def _finish():
        out_ref[...] = jnp.broadcast_to(
            jnp.sum(acc_ref[...]).reshape(1, 1, 1), out_ref.shape)


def ce_sum_dense(y_pred, y_true):
    """Sum over all pixels of softmax cross-entropy, via a single Pallas kernel.

    y_pred : [B, C, H, W] logits (NCHW; f32 or bf16 streamed as-is)
    y_true : [B, H, W]    integer class indices (int8/uint8/int32/... streamed as-is)
    """
    B, C, H, W = y_pred.shape
    HW = H * W

    logits = y_pred.reshape(B, C, HW)               # no transpose, no dtype widening
    if jnp.issubdtype(y_true.dtype, jnp.integer) and jnp.dtype(y_true.dtype).itemsize <= 4:
        labels = y_true.reshape(B, 1, HW)           # keep narrow producer dtype
    else:
        labels = y_true.reshape(B, 1, HW).astype(jnp.int32)

    logit_bytes = jnp.dtype(logits.dtype).itemsize
    label_bytes = jnp.dtype(labels.dtype).itemsize
    vmem_budget = _vmem_budget_bytes()
    tile = _pick_col_tile(HW, C, logit_bytes, label_bytes, vmem_budget)
    num_tiles = pl.cdiv(HW, tile)

    # v7x has 2 TensorCores: if the batch axis alone can't keep both busy, split the
    # pixel-tile axis into an extra parallel axis. Harmless on 1-TC v5e/v6e.
    P = 2 if (B < 2 and num_tiles >= 2 and num_tiles % 2 == 0) else 1
    tiles_per = num_tiles // P

    kern = functools.partial(ce_sum_kernel, total_cols=HW,
                             mask_tail=(HW % tile != 0))

    cost = pl.CostEstimate(
        flops=5 * B * HW * C,
        transcendentals=B * HW * (C + 1),
        bytes_accessed=B * HW * (C * logit_bytes + label_bytes) + B * P * 128 * 4,
    )

    partials = pl.pallas_call(
        kern,
        out_shape=jax.ShapeDtypeStruct((B * P, 1, 128), jnp.float32),
        grid_spec=pltpu.PrefetchScalarGridSpec(
            num_scalar_prefetch=0,
            grid=(B, P, tiles_per),
            in_specs=[
                pl.BlockSpec((1, C, tile), lambda b, p, t: (b, 0, p * tiles_per + t)),
                pl.BlockSpec((1, 1, tile), lambda b, p, t: (b, 0, p * tiles_per + t)),
            ],
            out_specs=pl.BlockSpec((1, 1, 128), lambda b, p, t: (b * P + p, 0, 0)),
            scratch_shapes=[pltpu.VMEM((1, tile), jnp.float32)],
        ),
        compiler_params=pltpu.CompilerParams(
            dimension_semantics=("parallel", "parallel", "arbitrary"),
            vmem_limit_bytes=int(vmem_budget),
        ),
        cost_estimate=cost,
    )(logits, labels)

    return jnp.sum(partials[:, 0, 0])


@functools.partial(jax.jit, static_argnames=("alpha", "beta", "debug"))
def combine_point_loss_forward(y_pred, y_true, points, labels, *, alpha, beta,
                               debug=False):
    """JAX/Pallas equivalent of combine_point_loss.forward.

    y_pred : [B, C, H, W]   segmentation logits (NCHW, PyTorch layout)
    y_true : [B, H, W]      per-pixel class indices
    points : [B, N, 2]      (row, col) click coordinates
    labels : [B, N]         class index at each click
    """
    # TODO(synk): the `device` argument of the PyTorch forward has no JAX
    # equivalent and is ignored.
    B, C, H, W = y_pred.shape

    # ---- dense generic loss: mean pixel-wise cross-entropy (Pallas) -------
    loss2 = ce_sum_dense(y_pred, y_true) / (B * H * W)

    # ---- point loss: cross-entropy at clicked pixels (tiny -> plain JAX) --
    # TODO(synk): out-of-bounds click coordinates are clamped by JAX indexing
    # instead of raising like PyTorch would.
    b_idx = jnp.arange(B, dtype=jnp.int32)[:, None]
    pt_logits = y_pred[b_idx, :, points[..., 0], points[..., 1]]    # (B, N, C)
    pt_logp = jax.nn.log_softmax(pt_logits.astype(jnp.float32), axis=-1)
    loss1 = -jnp.mean(jnp.take_along_axis(pt_logp, labels[..., None], axis=-1))

    # ---- combine (PyTorch print is flag-gated: host callback off hot path) ----
    if debug:
        jax.debug.print("point loss: {} gen loss: {}",
                        beta * alpha * loss1, beta * (1.0 - alpha) * loss2)
    return beta * (alpha * loss1 + (1.0 - alpha) * loss2)


if __name__ == "__main__":
    key = jax.random.PRNGKey(0)
    k1, k2, k3, k4, k5 = jax.random.split(key, 5)

    B, C, H, W, N = 2, 4, 16, 16, 8
    ALPHA, BETA = 0.7, 1.0   # deterministic "constructor" hyper-parameters

    y_pred = jax.random.normal(k1, (B, C, H, W), dtype=jnp.float32)
    y_true = jax.random.randint(k2, (B, H, W), 0, C, dtype=jnp.int32)
    points = jnp.stack(
        [jax.random.randint(k3, (B, N), 0, H, dtype=jnp.int32),
         jax.random.randint(k4, (B, N), 0, W, dtype=jnp.int32)], axis=-1)
    labels = jax.random.randint(k5, (B, N), 0, C, dtype=jnp.int32)

    out = combine_point_loss_forward(
        y_pred, y_true, points, labels, alpha=ALPHA, beta=BETA)
    out = jax.block_until_ready(out)

    # sanity check against a pure-JAX reference
    logp = jax.nn.log_softmax(jnp.transpose(y_pred, (0, 2, 3, 1)), axis=-1)
    ref_gen = -jnp.mean(
        jnp.take_along_axis(logp, y_true[..., None], axis=-1))
    pt_logp = logp[jnp.arange(B)[:, None], points[..., 0], points[..., 1]]
    ref_pt = -jnp.mean(
        jnp.take_along_axis(pt_logp, labels[..., None], axis=-1))
    ref = BETA * (ALPHA * ref_pt + (1.0 - ALPHA) * ref_gen)
    assert jnp.allclose(out, ref, atol=1e-5, rtol=1e-5), (out, ref)

    print("KERNEL_OK")
</pallas_src>

<mosaic_0001>
module attributes {stable_mosaic.version = 11 : i64} {
  func.func @ce_sum_kernel(%arg0: i32, %arg1: i32, %arg2: i32, %arg3: memref<1x4x256xf32, #tpu.memory_space<vmem>>, %arg4: memref<1x1x256xi32, #tpu.memory_space<vmem>>, %arg5: memref<1x1x128xf32, #tpu.memory_space<vmem>>, %arg6: memref<1x256xf32, #tpu.memory_space<vmem>>) attributes {dimension_semantics = [#tpu.dimension_semantics<parallel>, #tpu.dimension_semantics<parallel>, #tpu.dimension_semantics<arbitrary>], iteration_bounds = array<i64: 2, 1, 1>, scalar_prefetch = 0 : i64, scratch_operands = 1 : i64, tpu.core_type = #tpu.core_type<tc>, window_params = [{transform_indices = @transform_0, window_bounds = array<i64: 1, 4, 256>}, {transform_indices = @transform_1, window_bounds = array<i64: 1, 1, 256>}, {transform_indices = @transform_2, window_bounds = array<i64: 1, 1, 128>}]} {
    %c0_i32 = arith.constant 0 : i32
    %0 = arith.cmpi eq, %arg2, %c0_i32 : i32
    %1 = arith.extui %0 : i1 to i32
    %c0_i32_0 = arith.constant 0 : i32
    %2 = arith.cmpi ne, %1, %c0_i32_0 : i32
    scf.if %2 {
      %cst_15 = arith.constant 0.000000e+00 : f32
      %30 = vector.broadcast %cst_15 : f32 to vector<1x256xf32>
      %c0_16 = arith.constant 0 : index
      %c0_17 = arith.constant 0 : index
      %31 = vector.load %arg6[%c0_16, %c0_17] : memref<1x256xf32, #tpu.memory_space<vmem>>, vector<1x256xf32>
      tpu.vector_store %arg6[%c0_16, %c0_17], %30 {strides = array<i32>} : memref<1x256xf32, #tpu.memory_space<vmem>>, vector<1x256xf32>,
    } else {
    }
    %c0 = arith.constant 0 : index
    %c0_1 = arith.constant 0 : index
    %c0_2 = arith.constant 0 : index
    %3 = vector.load %arg3[%c0, %c0_1, %c0_2] : memref<1x4x256xf32, #tpu.memory_space<vmem>>, vector<1x4x256xf32>
    %4 = vector.shape_cast %3 : vector<1x4x256xf32> to vector<4x256xf32>
    %c0_3 = arith.constant 0 : index
    %c0_4 = arith.constant 0 : index
    %c0_5 = arith.constant 0 : index
    %5 = vector.load %arg4[%c0_3, %c0_4, %c0_5] : memref<1x1x256xi32, #tpu.memory_space<vmem>>, vector<1x1x256xi32>
    %6 = vector.shape_cast %5 : vector<1x1x256xi32> to vector<1x256xi32>
    %cst = arith.constant dense<0xFF800000> : vector<256xf32>
    %7 = vector.multi_reduction <maximumf>, %4, %cst [0] : vector<4x256xf32> to vector<256xf32>
    %8 = vector.shape_cast %7 : vector<256xf32> to vector<1x256xf32>
    %9 = vector.broadcast %8 : vector<1x256xf32> to vector<4x256xf32>
    %10 = arith.subf %4, %9 : vector<4x256xf32>
    %11 = math.exp %10 : vector<4x256xf32>
    %cst_6 = arith.constant dense<0.000000e+00> : vector<256xf32>
    %12 = vector.multi_reduction <add>, %11, %cst_6 [0] : vector<4x256xf32> to vector<256xf32>
    %13 = vector.shape_cast %12 : vector<256xf32> to vector<1x256xf32>
    %14 = math.log %13 : vector<1x256xf32>
    %15 = arith.addf %8, %14 : vector<1x256xf32>
    %16 = tpu.iota {dimensions = array<i32: 0>} : vector<4x256xi32>
    %17 = vector.broadcast %6 : vector<1x256xi32> to vector<4x256xi32>
    %18 = arith.cmpi eq, %16, %17 : vector<4x256xi32>
    %cst_7 = arith.constant 0.000000e+00 : f32
    %19 = vector.broadcast %cst_7 : f32 to vector<4x256xf32>
    %20 = arith.select %18, %4, %19 : vector<4x256xi1>, vector<4x256xf32>
    %cst_8 = arith.constant dense<0.000000e+00> : vector<256xf32>
    %21 = vector.multi_reduction <add>, %20, %cst_8 [0] : vector<4x256xf32> to vector<256xf32>
    %22 = vector.shape_cast %21 : vector<256xf32> to vector<1x256xf32>
    %23 = arith.subf %15, %22 : vector<1x256xf32>
    %c0_9 = arith.constant 0 : index
    %c0_10 = arith.constant 0 : index
    %24 = vector.load %arg6[%c0_9, %c0_10] : memref<1x256xf32, #tpu.memory_space<vmem>>, vector<1x256xf32>
    %25 = arith.addf %24, %23 : vector<1x256xf32>
    %c0_11 = arith.constant 0 : index
    %c0_12 = arith.constant 0 : index
    %26 = vector.load %arg6[%c0_11, %c0_12] : memref<1x256xf32, #tpu.memory_space<vmem>>, vector<1x256xf32>
    tpu.vector_store %arg6[%c0_11, %c0_12], %25 {strides = array<i32>} : memref<1x256xf32, #tpu.memory_space<vmem>>, vector<1x256xf32>,
    %c0_i32_13 = arith.constant 0 : i32
    %27 = arith.cmpi eq, %arg2, %c0_i32_13 : i32
    %28 = arith.extui %27 : i1 to i32
    %c0_i32_14 = arith.constant 0 : i32
    %29 = arith.cmpi ne, %28, %c0_i32_14 : i32
    scf.if %29 {
      %c0_15 = arith.constant 0 : index
      %c0_16 = arith.constant 0 : index
      %30 = vector.load %arg6[%c0_15, %c0_16] : memref<1x256xf32, #tpu.memory_space<vmem>>, vector<1x256xf32>
      %31 = vector.shape_cast %30 : vector<1x256xf32> to vector<1x1x256xf32>
      %cst_17 = arith.constant dense<0.000000e+00> : vector<1xf32>
      %32 = vector.multi_reduction <add>, %31, %cst_17 [1, 2] : vector<1x1x256xf32> to vector<1xf32>
      %33 = vector.shape_cast %32 : vector<1xf32> to vector<1x1x1xf32>
      %34 = vector.extract %33[0, 0, 0] : f32 from vector<1x1x1xf32>
      %35 = vector.broadcast %34 : f32 to vector<1x1x1xf32>
      %36 = vector.shape_cast %35 : vector<1x1x1xf32> to vector<1x1x1xf32>
      %37 = vector.broadcast %36 : vector<1x1x1xf32> to vector<1x1x128xf32>
      %c0_18 = arith.constant 0 : index
      %c0_19 = arith.constant 0 : index
      %c0_20 = arith.constant 0 : index
      %38 = vector.load %arg5[%c0_18, %c0_19, %c0_20] : memref<1x1x128xf32, #tpu.memory_space<vmem>>, vector<1x1x128xf32>
      tpu.vector_store %arg5[%c0_18, %c0_19, %c0_20], %37 {strides = array<i32>} : memref<1x1x128xf32, #tpu.memory_space<vmem>>, vector<1x1x128xf32>,
    } else {
    }
    return
  }
  func.func @transform_0(%arg0: i32, %arg1: i32, %arg2: i32) -> (i32, i32, i32) {
    %c1_i32 = arith.constant 1 : i32
    %0 = arith.muli %arg1, %c1_i32 : i32
    %1 = arith.addi %0, %arg2 : i32
    %c0_i32 = arith.constant 0 : i32
    %c0_i32_0 = arith.constant 0 : i32
    return %arg0, %c0_i32, %1 : i32, i32, i32
  }
  func.func @transform_1(%arg0: i32, %arg1: i32, %arg2: i32) -> (i32, i32, i32) {
    %c1_i32 = arith.constant 1 : i32
    %0 = arith.muli %arg1, %c1_i32 : i32
    %1 = arith.addi %0, %arg2 : i32
    %c0_i32 = arith.constant 0 : i32
    %c0_i32_0 = arith.constant 0 : i32
    return %arg0, %c0_i32, %1 : i32, i32, i32
  }
  func.func @transform_2(%arg0: i32, %arg1: i32, %arg2: i32) -> (i32, i32, i32) {
    %c1_i32 = arith.constant 1 : i32
    %0 = arith.muli %arg0, %c1_i32 : i32
    %1 = arith.addi %0, %arg1 : i32
    %c0_i32 = arith.constant 0 : i32
    %c0_i32_0 = arith.constant 0 : i32
    %c0_i32_1 = arith.constant 0 : i32
    return %1, %c0_i32, %c0_i32_0 : i32, i32, i32
  }
}

</mosaic_0001>

<llo_original>
// kernel: combine_point_loss_forward.1
$region0: #{combine_point_loss_forward.1}
  #allocation0 [shape = 'u32[]', space=smem, size = 0x4, offset = 0x4, fixed_abs, tag = 'smem constant byte address 0x4 - core index']
  #allocation1 [shape = 'u32[72,128]{1,0:T(1,128)}', space=vmem, size = 0x9000, scoped, tag = 'internal scratch']
  #allocation2 [shape = 'f32[1,256]{1,0:T(1,128)}', space=vmem, size = 0x400, scoped, tag = 'scratch operand']
  %s0 = inlined_call_operand.vmem [shape: f32[2,4,256], index: 0, kind: input, shape index: {}]
  %s1 = inlined_call_operand.vmem [shape: s32[2,1,256], index: 1, kind: input, shape index: {}]
  %s2 = inlined_call_operand.vmem [shape: f32[2,1,128], index: 2, kind: output, shape index: {}]
  %s3 = sld [smem:[#allocation0]]
  $region49: #{combine_point_loss_forward.1} parent=0
    _
  %s5 = ssub.s32 1, %s3
  %s6 = scalar_select 0, %s5, %s3
  loop: start=0, step=1, limit=4
  $region2: #{combine_point_loss_forward.1} parent=0 // loop_pre_header
    _
  $region3: #{combine_point_loss_forward.1} parent=0 // loop_header
    %s8 = sphi 0, %s12
    %p9 = scmp.ge.s32.totalorder %s8, 4
    %s15 = sphi 0, %s34
    %s16 = sphi 0, %s30
    %s17 = sphi 0, %s26
    %s18 = sphi 0, %s15
    %s19 = sphi 0, %s16
    %s20 = sphi 0, %s17
    %s21 = sphi 0, %s18
    %s22 = sphi 0, %s19
    %s23 = sphi 0, %s20
    %s41 = sphi 0, %s43
    %s44 = sphi 0, %s41
    %s45 = sphi 0, %s44
    %s61 = sphi 0, %s45
    %s71 = sphi 0, %s73
    %s74 = sphi 0, %s71
    %s75 = sphi 0, %s74
    %s91 = sphi 0, %s75
    %s99 = sphi 0, %s101
    %s102 = sphi 0, %s99
    %s103 = sphi 0, %s102
    %s119 = sphi 0, %s103
  $region4: #{combine_point_loss_forward.1} parent=0 // loop_header_branch
    %11 = sbr.rel (%p9) target = $region8
  $region5: #{combine_point_loss_forward.1} parent=0 // loop_body
    %s13 = ssub.s32 %s8, 1
    %s14 = ssub.s32 %s8, 2
    %s24 = sadd.s32 1, %s17
    %p25 = scmp.ge.s32.totalorder %s24, 1
    %s26 = scalar_select %p25, 0, %s24
    %s27 = sadd.s32 1, %s16
    %s28 = scalar_select %p25, %s27, %s16
    %p29 = scmp.ge.s32.totalorder %s28, 1
    %s30 = scalar_select %p29, 0, %s28
    %s31 = sadd.s32 1, %s15
    %s32 = scalar_select %p29, %s31, %s15
    %p33 = scmp.ge.s32.totalorder %s32, 2
    %s34 = scalar_select %p33, 0, %s32
    %s35 = sadd.s32 %s16, %s17
    %s36 = sadd.s32 %s30, %s26
    %s37 = ssub.s32 %s15, %s34
    %s38 = ssub.s32 %s35, %s36
    %s39 = sor.u32 %s37, %s38
    %p40 = scmp.eq.s32.totalorder %s39, 0
    %s42 = sadd.s32 %s41, 1
    %s43 = scalar_select %p40, %s41, %s42
    %p46 = pneg %p40
    %p47 = scmp.eq.s32.totalorder %s8, 1
    %p48 = por %p46, %p47
    %p49 = scmp.ne.s32.totalorder %s41, %s44
    %p50 = scmp.eq.s32.totalorder %s8, 0
    %p51 = por %p49, %p50
    %p52 = scmp.ne.s32.totalorder %s41, %s44
    %p53 = scmp.eq.s32.totalorder %s13, 1
    %p54 = por %p52, %p53
    %p55 = scmp.ne.s32.totalorder %s44, %s45
    %p56 = scmp.eq.s32.totalorder %s13, 0
    %p57 = por %p55, %p56
    %p58 = scmp.ne.s32.totalorder %s44, %s45
    %p59 = scmp.eq.s32.totalorder %s14, 1
    %p60 = por %p58, %p59
    %p62 = scmp.ne.s32.totalorder %s45, %s61
    %p63 = scmp.eq.s32.totalorder %s14, 0
    %p64 = por %p62, %p63
    %s65 = sadd.s32 %s16, %s17
    %s66 = sadd.s32 %s30, %s26
    %s67 = ssub.s32 %s15, %s34
    %s68 = ssub.s32 %s65, %s66
    %s69 = sor.u32 %s67, %s68
    %p70 = scmp.eq.s32.totalorder %s69, 0
    %s72 = sadd.s32 %s71, 1
    %s73 = scalar_select %p70, %s71, %s72
    %p76 = pneg %p70
    %p77 = scmp.eq.s32.totalorder %s8, 1
    %p78 = por %p76, %p77
    %p79 = scmp.ne.s32.totalorder %s71, %s74
    %p80 = scmp.eq.s32.totalorder %s8, 0
    %p81 = por %p79, %p80
    %p82 = scmp.ne.s32.totalorder %s71, %s74
    %p83 = scmp.eq.s32.totalorder %s13, 1
    %p84 = por %p82, %p83
    %p85 = scmp.ne.s32.totalorder %s74, %s75
    %p86 = scmp.eq.s32.totalorder %s13, 0
    %p87 = por %p85, %p86
    %p88 = scmp.ne.s32.totalorder %s74, %s75
    %p89 = scmp.eq.s32.totalorder %s14, 1
    %p90 = por %p88, %p89
    %p92 = scmp.ne.s32.totalorder %s75, %s91
    %p93 = scmp.eq.s32.totalorder %s14, 0
    %p94 = por %p92, %p93
    %s95 = sadd.s32 %s15, %s16
    %s96 = sadd.s32 %s34, %s30
    %s97 = ssub.s32 %s95, %s96
    %p98 = scmp.eq.s32.totalorder %s97, 0
    %s100 = sadd.s32 %s99, 1
    %s101 = scalar_select %p98, %s99, %s100
    %p104 = pneg %p98
    %p105 = scmp.eq.s32.totalorder %s8, 1
    %p106 = por %p104, %p105
    %p107 = scmp.ne.s32.totalorder %s99, %s102
    %p108 = scmp.eq.s32.totalorder %s8, 0
    %p109 = por %p107, %p108
    %p110 = scmp.ne.s32.totalorder %s99, %s102
    %p111 = scmp.eq.s32.totalorder %s13, 1
    %p112 = por %p110, %p111
    %p113 = scmp.ne.s32.totalorder %s102, %s103
    %p114 = scmp.eq.s32.totalorder %s13, 0
    %p115 = por %p113, %p114
    %p116 = scmp.ne.s32.totalorder %s102, %s103
    %p117 = scmp.eq.s32.totalorder %s14, 1
    %p118 = por %p116, %p117
    %p120 = scmp.ne.s32.totalorder %s103, %s119
    %p121 = scmp.eq.s32.totalorder %s14, 0
    %p122 = por %p120, %p121
    %p123 = scmp.le.s32.totalorder 1, %s8
    %p124 = scmp.lt.s32.totalorder %s8, 3
    %p125 = pnand %p123, %p124
    %p126 = pneg %p125
    // Predicated region
    $region9: #{combine_point_loss_forward.1} parent=5 // pred_check
      _
    $region10: #{combine_point_loss_forward.1} parent=5 // pred_check_branch
      %128 = sbr.rel (%p125) target = $region12
    $region11: #{combine_point_loss_forward.1} parent=5 // pred_region
      %s129 = ssub.s32 %s8, 1
    $region12: #{combine_point_loss_forward.1} parent=5 // pred_fallthru
      _
    %p130 = scmp.lt.s32.totalorder %s8, 2
    // Predicated region
    $region13: #{combine_point_loss_forward.1} parent=5 // pred_check
      %p131 = pneg %p130
    $region14: #{combine_point_loss_forward.1} parent=5 // pred_check_branch
      %133 = sbr.rel (%p131) target = $region16
    $region15: #{combine_point_loss_forward.1} parent=5 // pred_region
      // Predicated region
      $region17: #{combine_point_loss_forward.1} parent=15 // pred_check
        %p134 = pneg %p51
      $region18: #{combine_point_loss_forward.1} parent=15 // pred_check_branch
        %136 = sbr.rel (%p134) target = $region20
      $region19: #{combine_point_loss_forward.1} parent=15 // pred_region
        %s137 = sadd.s32 %s16, %s17
        %s138 = smul.u32 2, %s137
        %p139 = scmp.lt.s32.totalorder %s15, 1
        %s140 = scalar_select %p139, %s15, 1
        %p141 = scmp.lt.s32.totalorder %s138, 1
        %s142 = scalar_select %p141, %s138, 1
        %s143 = smul.addr %s140, 2
        %s144 = sadd.s32 %s142, %s143
        %s145 = smul.addr %s144, 4
        %s146 = scalar_lea.vmem %s0, %s145
        %s147 = sadd.s32 %s16, %s17
        %s148 = smul.u32 2, %s147
      $region20: #{combine_point_loss_forward.1} parent=15 // pred_fallthru
        _
      // Predicated region
      $region21: #{combine_point_loss_forward.1} parent=15 // pred_check
        %p149 = pneg %p81
      $region22: #{combine_point_loss_forward.1} parent=15 // pred_check_branch
        %151 = sbr.rel (%p149) target = $region24
      $region23: #{combine_point_loss_forward.1} parent=15 // pred_region
        %s152 = sadd.s32 %s16, %s17
        %s153 = smul.u32 2, %s152
        %p154 = scmp.lt.s32.totalorder %s15, 1
        %s155 = scalar_select %p154, %s15, 1
        %p156 = scmp.lt.s32.totalorder %s153, 1
        %s157 = scalar_select %p156, %s153, 1
        %s158 = smul.addr %s155, 2
        %s159 = sadd.s32 %s157, %s158
        %s160 = scalar_lea.vmem %s1, %s159
        %s161 = sadd.s32 %s16, %s17
        %s162 = smul.u32 2, %s161
      $region24: #{combine_point_loss_forward.1} parent=15 // pred_fallthru
        _
    $region16: #{combine_point_loss_forward.1} parent=5 // pred_fallthru
      _
    %p163 = scmp.le.s32.totalorder 1, %s8
    %p164 = scmp.lt.s32.totalorder %s8, 3
    %p165 = pnand %p163, %p164
    %p166 = pneg %p165
    // Predicated region
    $region25: #{combine_point_loss_forward.1} parent=5 // pred_check
      _
    $region26: #{combine_point_loss_forward.1} parent=5 // pred_check_branch
      %168 = sbr.rel (%p165) target = $region28
    $region27: #{combine_point_loss_forward.1} parent=5 // pred_region
      %s169 = ssub.s32 %s8, 1
      %s170 = sadd.s32 %s19, %s20
      %s171 = smul.u32 2, %s170
      %p172 = scmp.lt.s32.totalorder %s18, 1
      %s173 = scalar_select %p172, %s18, 1
      %p174 = scmp.lt.s32.totalorder %s171, 1
      %s175 = scalar_select %p174, %s171, 1
      %s176 = smul.addr %s173, 2
      %s177 = sadd.s32 %s175, %s176
      %s178 = smul.addr %s177, 4
      %s179 = scalar_lea.vmem %s0, %s178
      %p180 = pneg %p57
      %p181 = pneg %p54
      %s182 = sadd.s32 %s19, %s20
      %s183 = smul.u32 2, %s182
      %p184 = scmp.lt.s32.totalorder %s18, 1
      %s185 = scalar_select %p184, %s18, 1
      %p186 = scmp.lt.s32.totalorder %s183, 1
      %s187 = scalar_select %p186, %s183, 1
      %s188 = smul.addr %s185, 2
      %s189 = sadd.s32 %s187, %s188
      %s190 = scalar_lea.vmem %s1, %s189
      %p191 = pneg %p87
      %p192 = pneg %p84
      %p193 = pneg %p115
      %p194 = pneg %p112
      %s195 = sadd.s32 %s18, %s19
      %p196 = scmp.lt.s32.totalorder %s195, 1
      %s197 = scalar_select %p196, %s195, 1
      %s198 = scalar_lea.vmem %s2, %s197
      %s199 = sadd.s32 %s19, %s20
      %s200 = smul.u32 2, %s199
      %p201 = scmp.lt.s32.totalorder %s18, 1
      %s202 = scalar_select %p201, %s18, 1
      %p203 = scmp.lt.s32.totalorder %s200, 1
      %s204 = scalar_select %p203, %s200, 1
      %s205 = smul.addr %s202, 2
      %s206 = sadd.s32 %s204, %s205
      %s207 = smul.addr %s206, 4
      %s208 = scalar_lea.vmem %s0, %s207
      %s209 = sadd.s32 %s19, %s20
      %s210 = smul.u32 2, %s209
      %s211 = sadd.s32 %s19, %s20
      %s212 = smul.u32 2, %s211
      %p213 = scmp.lt.s32.totalorder %s18, 1
      %s214 = scalar_select %p213, %s18, 1
      %p215 = scmp.lt.s32.totalorder %s212, 1
      %s216 = scalar_select %p215, %s212, 1
      %s217 = smul.addr %s214, 2
      %s218 = sadd.s32 %s216, %s217
      %s219 = scalar_lea.vmem %s1, %s218
      %s220 = sadd.s32 %s19, %s20
      %s221 = smul.u32 2, %s220
      %s222 = sadd.s32 %s18, %s19
      %p223 = scmp.lt.s32.totalorder %s222, 1
      %s224 = scalar_select %p223, %s222, 1
      %s225 = scalar_lea.vmem %s2, %s224
      %s226 = sadd.s32 %s18, %s19
      %p227 = scmp.eq.s32.totalorder %s20, 0
      // Predicated region
      $region29: #{combine_point_loss_forward.1} parent=27 // pred_check
        %p228 = pneg %p227
      $region30: #{combine_point_loss_forward.1} parent=27 // pred_check_branch
        %230 = sbr.rel (%p228) target = $region32
      $region31: #{combine_point_loss_forward.1} parent=27 // pred_region
        %v231 = vlaneseq
        %vm232 = vcmp.ge.s32.totalorder %v231, 0
        %vm233 = vcmp.lt.s32.totalorder %v231, 256
        %vm234 = vmand %vm232, %vm233
        %235 = vst.msk [vmem:[#allocation2] sm:$0x3] %vm234, 0.0
      $region32: #{combine_point_loss_forward.1} parent=27 // pred_fallthru
        _
      %v236 = vld [vmem:[%s208] sm:$0xff]
      %v237 = vld [vmem:[%s219] sm:$0x3]
      %239 = vst [vmem:[#allocation1] ss:$2 sm:$0xff] %v236
      %v240 = vld.sshfl [vmem:[#allocation1] sm:$0xff pattern:$0x75316420]
      %v241 = vld.sshfl [vmem:[#allocation1 + $0x8] sm:$0xff pattern:$0x75316420]
      %vm244 = vcmask 1043456
      %v245 = vsel %vm244, %v240, -inf
      %v246 = vrot.slane %v245, 4
      %v247 = vmax.f32 %v245, %v246
      %v248 = vrot.slane %v247, 2
      %v249 = vmax.f32 %v247, %v248
      %v250 = vrot.slane %v249, 1
      %v251 = vmax.f32 %v249, %v250
      %v252 = vsel %vm244, %v241, -inf
      %v253 = vrot.slane %v252, 4
      %v254 = vmax.f32 %v252, %v253
      %v255 = vrot.slane %v254, 2
      %v256 = vmax.f32 %v254, %v255
      %v257 = vrot.slane %v256, 1
      %v258 = vmax.f32 %v256, %v257
      %v261 = vrot.slane %v258, 4
      %v262 = vsel %vm244, %v251, %v261
      %v264 = vsub.f32 %v236, %v262
      %v265 = vmul.f32 %v264, 1.442695
      %v266 = vpow.pop %v265
      %268 = vst [vmem:[#allocation1] ss:$2 sm:$0xff] %v266
      %v269 = vld.sshfl [vmem:[#allocation1] sm:$0xff pattern:$0x75316420]
      %v270 = vld.sshfl [vmem:[#allocation1 + $0x8] sm:$0xff pattern:$0x75316420]
      %v273 = vsel %vm244, %v269, 0.0
      %v274 = vrot.slane %v273, 4
      %v275 = vadd.f32 %v273, %v274
      %v276 = vrot.slane %v275, 2
      %v277 = vadd.f32 %v275, %v276
      %v278 = vrot.slane %v277, 1
      %v279 = vadd.f32 %v277, %v278
      %v280 = vsel %vm244, %v270, 0.0
      %v281 = vrot.slane %v280, 4
      %v282 = vadd.f32 %v280, %v281
      %v283 = vrot.slane %v282, 2
      %v284 = vadd.f32 %v282, %v283
      %v285 = vrot.slane %v284, 1
      %v286 = vadd.f32 %v284, %v285
      %v287 = vlog2.pop %v279
      %v288 = vmul.f32 %v287, 0.6931472
      %v289 = vlog2.pop %v286
      %v290 = vmul.f32 %v289, 0.6931472
      %v291 = vadd.f32 %v251, %v288
      %v292 = vadd.f32 %v258, %v290
      %v293 = vlaneseq
      %v294 = vshrl.u32 %v293, 7
      %v295 = vperm.slane %v237, 0
      %v296 = vperm.slane %v237, 1
      %vm297 = vcmp.eq.s32.totalorder %v294, %v295
      %vm298 = vcmp.eq.s32.totalorder %v294, %v296
      %299 = vst [vmem:[#allocation1] ss:$2 sm:$0xff] %v236
      %v300 = vld.sshfl [vmem:[#allocation1] sm:$0xff pattern:$0x75316420]
      %v301 = vld.sshfl [vmem:[#allocation1 + $0x8] sm:$0xff pattern:$0x75316420]
      %v304 = vsel %vm297, %v300, 0.0
      %v305 = vsel %vm298, %v301, 0.0
      %v306 = vsel %vm244, %v304, 0.0
      %v307 = vrot.slane %v306, 4
      %v308 = vadd.f32 %v306, %v307
      %v309 = vrot.slane %v308, 2
      %v310 = vadd.f32 %v308, %v309
      %v311 = vrot.slane %v310, 1
      %v312 = vadd.f32 %v310, %v311
      %v313 = vsel %vm244, %v305, 0.0
      %v314 = vrot.slane %v313, 4
      %v315 = vadd.f32 %v313, %v314
      %v316 = vrot.slane %v315, 2
      %v317 = vadd.f32 %v315, %v316
      %v318 = vrot.slane %v317, 1
      %v319 = vadd.f32 %v317, %v318
      %v320 = vsub.f32 %v291, %v312
      %v321 = vsub.f32 %v292, %v319
      %v322 = vld [vmem:[#allocation2] sm:$0x3]
      %v325 = vrot.slane %v321, 7
      %vm326 = vcmask 1040384
      %v327 = vsel %vm326, %v320, %v325
      %v329 = vadd.f32 %v322, %v327
      %v330 = vlaneseq
      %vm331 = vcmp.ge.s32.totalorder %v330, 0
      %vm332 = vcmp.lt.s32.totalorder %v330, 256
      %vm333 = vmand %vm331, %vm332
      %334 = vst.msk [vmem:[#allocation2] sm:$0x3] %vm333, %v329
      // Predicated region
      $region33: #{combine_point_loss_forward.1} parent=27 // pred_check
        %p335 = pneg %p227
      $region34: #{combine_point_loss_forward.1} parent=27 // pred_check_branch
        %337 = sbr.rel (%p335) target = $region36
      $region35: #{combine_point_loss_forward.1} parent=27 // pred_region
        %v338 = vld [vmem:[#allocation2] sm:$0x3]
        %v340 = vperm.slane %v338, 0
        %v341 = vperm.slane %v338, 1
        %v344 = vsel %vm326, %v340, 0.0
        %v345 = vsel %vm326, %v341, 0.0
        %v346 = vadd.f32 %v344, %v345
        %347 = vadd.xlane.f32.xlu0 %v346
        %v348 = vpop.xlane.xlu0 %347
        %v349 = vrot.slane %v348, 4
        %v350 = vadd.f32 %v348, %v349
        %v351 = vrot.slane %v350, 2
        %v352 = vadd.f32 %v350, %v351
        %v353 = vrot.slane %v352, 1
        %v354 = vadd.f32 %v352, %v353
        %s355 = vtos %v354
        %v356 = vstv %s355
        %357 = vst [vmem:[%s225] sm:$0x1] %v356
      $region36: #{combine_point_loss_forward.1} parent=27 // pred_fallthru
        _
      %s358 = sadd.s32 %s18, %s19
      %p359 = scmp.lt.s32.totalorder %s358, 1
      %s360 = scalar_select %p359, %s358, 1
      %s361 = scalar_lea.vmem %s2, %s360
      // Predicated region
      $region37: #{combine_point_loss_forward.1} parent=27 // pred_check
        %p362 = pneg %p112
      $region38: #{combine_point_loss_forward.1} parent=27 // pred_check_branch
        %364 = sbr.rel (%p362) target = $region40
      $region39: #{combine_point_loss_forward.1} parent=27 // pred_region
        %s365 = sadd.s32 %s18, %s19
      $region40: #{combine_point_loss_forward.1} parent=27 // pred_fallthru
        _
    $region28: #{combine_point_loss_forward.1} parent=5 // pred_fallthru
      _
    %p366 = scmp.le.s32.totalorder 2, %s8
    // Predicated region
    $region41: #{combine_point_loss_forward.1} parent=5 // pred_check
      %p367 = pneg %p366
    $region42: #{combine_point_loss_forward.1} parent=5 // pred_check_branch
      %369 = sbr.rel (%p367) target = $region44
    $region43: #{combine_point_loss_forward.1} parent=5 // pred_region
      %s370 = ssub.s32 %s8, 2
      // Predicated region
      $region45: #{combine_point_loss_forward.1} parent=43 // pred_check
        %p371 = pneg %p118
      $region46: #{combine_point_loss_forward.1} parent=43 // pred_check_branch
        %373 = sbr.rel (%p371) target = $region48
      $region47: #{combine_point_loss_forward.1} parent=43 // pred_region
        %s374 = sadd.s32 %s21, %s22
        %p375 = scmp.lt.s32.totalorder %s374, 1
        %s376 = scalar_select %p375, %s374, 1
        %s377 = scalar_lea.vmem %s2, %s376
      $region48: #{combine_point_loss_forward.1} parent=43 // pred_fallthru
        _
    $region44: #{combine_point_loss_forward.1} parent=5 // pred_fallthru
      _
  $region6: #{combine_point_loss_forward.1} parent=0 // loop_footer
    %s12 = sadd.s32 1, %s8
  $region7: #{combine_point_loss_forward.1} parent=0 // loop_footer_branch
    %7 = sbr.rel target = $region3
  $region8: #{combine_point_loss_forward.1} parent=0 // loop_exit
    _

</llo_original>
